<compile_context>
chip_gen: v6e
topology: v6e:2x2x1
jax: 0.10.0
libtpu: 0.0.40
codegen_flags: <defaults>
</compile_context>

<pallas_src>
import functools

import jax
import jax.numpy as jnp
from jax.experimental import pallas as pl
from jax.experimental.pallas import tpu as pltpu


# ----------------------------------------------------------------------------
# Fused Bottleneck kernel: conv1+BN+SiLU -> conv2+BN+SiLU (+ residual add)
# One grid step processes a block of B images; everything stays in VMEM.
# ----------------------------------------------------------------------------
def _bottleneck_kernel(x_ref, w1_ref, b1_ref, w2_ref, b2_ref, out_ref, *,
                       K, H, W, C1, Cm, C2, B, add):
    p = K // 2
    M = B * H

    x = x_ref[...]  # (B, H, W*C1) f32

    def shifted_taps(a):
        """(B, H, L) f32 -> (B*H, K*L) bf16.

        Block ky of the output holds the slab shifted so that row h contains
        image-row (h + ky - p), zero-filled at the per-image H boundaries
        (the W zero padding is already folded into the banded weights).
        Built as values -> no halo scratch round-trip, no misaligned reloads.
        """
        Bm, Hm, L = a.shape
        taps = []
        for ky in range(K):
            s = ky - p
            if s == 0:
                taps.append(a)
            elif s > 0:
                z = jnp.zeros((Bm, s, L), a.dtype)
                taps.append(jnp.concatenate([a[:, s:, :], z], axis=1))
            else:
                z = jnp.zeros((Bm, -s, L), a.dtype)
                taps.append(jnp.concatenate([z, a[:, :Hm + s, :]], axis=1))
        cat = jnp.concatenate(taps, axis=-1)          # (B, H, K*L), f32
        return cat.reshape(Bm * Hm, K * L).astype(jnp.bfloat16)

    # ---- conv1 (3x3) + BN + SiLU: one MXU dot, BN scale folded into weights
    lhs1 = shifted_taps(x)                                        # (M, K*W*C1)
    y1 = jnp.dot(lhs1, w1_ref[...], preferred_element_type=jnp.float32)
    y1 = y1 + b1_ref[...]                                         # (M, W*Cm)
    y1 = y1 * jax.nn.sigmoid(y1)                                  # SiLU, f32

    # ---- conv2 (3x3) + BN + SiLU
    lhs2 = shifted_taps(y1.reshape(B, H, W * Cm))                 # (M, K*W*Cm)
    y2 = jnp.dot(lhs2, w2_ref[...], preferred_element_type=jnp.float32)
    y2 = y2 + b2_ref[...]                                         # (M, W*C2)
    y2 = y2 * jax.nn.sigmoid(y2)

    if add:
        y2 = y2 + x.reshape(M, W * C1)                            # residual, f32

    out_ref[...] = y2.reshape(B, H, W * C2).astype(out_ref.dtype)


# ----------------------------------------------------------------------------
# Wrapper helpers
# ----------------------------------------------------------------------------
def _expand_conv_weight(w, scale, W):
    """(K,K,Cin,Cout) HWIO weight (+ folded BN scale) -> (K*W*Cin, W*Cout).

    Banded matrix per ky (kx taps and the 'same' W zero padding folded in),
    pre-concatenated along the contraction axis so each conv is ONE dot.
    """
    K, _, Cin, Cout = w.shape
    p = K // 2
    ws = w * scale                                    # fold BN scale over Cout
    kx = jnp.arange(K)[:, None, None]
    w_in = jnp.arange(W)[None, :, None]
    w_out = jnp.arange(W)[None, None, :]
    sel = (w_in == w_out + kx - p).astype(w.dtype)    # (K, W_in, W_out)
    big = jnp.einsum('yxio,xvw->yviwo', ws, sel)      # (K, W, Cin, W, Cout)
    return big.reshape(K * W * Cin, W * Cout)


def _pad_mid_channels(w1, s1, b1, w2, W):
    """Zero-pad the mid channels so W*Cm is a multiple of 128 (lane-dense y1)."""
    Cm = w1.shape[3]
    target = -(-(W * Cm) // 128) * 128
    if target % W != 0:           # cannot express the pad as whole channels
        return w1, s1, b1, w2, Cm
    Cm_pad = target // W
    pad = Cm_pad - Cm
    if pad > 0:
        w1 = jnp.pad(w1, ((0, 0), (0, 0), (0, 0), (0, pad)))
        s1 = jnp.pad(s1, ((0, pad),))
        b1 = jnp.pad(b1, ((0, pad),))
        w2 = jnp.pad(w2, ((0, 0), (0, 0), (0, pad), (0, 0)))
    return w1, s1, b1, w2, Cm_pad


def _pick_batch_block(n, h, row_target=256, row_cap=2048):
    """Largest/smallest divisor of n giving matmul-M near row_target rows."""
    divs = [b for b in range(1, n + 1) if n % b == 0 and b * h <= row_cap]
    if not divs:
        return 1
    for b in divs:
        if b * h >= row_target:
            return b
    return divs[-1]


def _const_spec(shape):
    """BlockSpec for a constant-index input; single-buffered when supported."""
    idx = lambda *_: (0,) * len(shape)
    if hasattr(pl, "Buffered"):
        try:
            return pl.BlockSpec(shape, idx, pipeline_mode=pl.Buffered(1))
        except TypeError:
            pass
    return pl.BlockSpec(shape, idx)


# ----------------------------------------------------------------------------
# Pallas entry point
# ----------------------------------------------------------------------------
def bottleneck_pallas(x_nhwc, params, shortcut=True):
    """x_nhwc: (N, H, W, C1); params hold HWIO weights + folded BN scale/bias."""
    N, H, W, C1 = x_nhwc.shape
    w1, s1, b1 = params["w1"], params["s1"], params["b1"]
    w2, s2, b2 = params["w2"], params["s2"], params["b2"]
    K = w1.shape[0]
    C2 = w2.shape[3]
    add = bool(shortcut) and (C1 == C2)

    # Lane-dense intermediate (pad mid channels so W*Cm % 128 == 0).
    w1, s1, b1, w2, Cm = _pad_mid_channels(w1, s1, b1, w2, W)

    # Banded, K-concatenated, BN-folded weights in bf16 (f32 accumulate on MXU).
    w1_cat = _expand_conv_weight(w1, s1, W).astype(jnp.bfloat16)  # (K*W*C1, W*Cm)
    w2_cat = _expand_conv_weight(w2, s2, W).astype(jnp.bfloat16)  # (K*W*Cm, W*C2)
    b1_flat = jnp.tile(b1, W).reshape(1, W * Cm).astype(jnp.float32)
    b2_flat = jnp.tile(b2, W).reshape(1, W * C2).astype(jnp.float32)

    # VMEM guard: banded weights scale as (W*C)^2 and must stay well inside
    # VMEM (v7x has only 64 MiB total).
    w_bytes = 2 * (w1_cat.size + w2_cat.size)
    if w_bytes > 24 * (1 << 20):
        # TODO(synk): W-striped (row-stripe + halo) im2col fallback for large W*C.
        raise ValueError(
            f"banded conv weights ({w_bytes} B) exceed the VMEM budget; "
            "use a W-striped im2col formulation for this shape")

    B_blk = _pick_batch_block(N, H)
    grid = (N // B_blk,)
    x_flat = x_nhwc.reshape(N, H, W * C1)       # row-slab layout, lane = W*C

    kernel = functools.partial(
        _bottleneck_kernel, K=K, H=H, W=W, C1=C1, Cm=Cm, C2=C2, B=B_blk, add=add)

    out_flat = pl.pallas_call(
        kernel,
        out_shape=jax.ShapeDtypeStruct((N, H, W * C2), x_nhwc.dtype),
        grid=grid,
        in_specs=[
            pl.BlockSpec((B_blk, H, W * C1), lambda b: (b, 0, 0)),
            _const_spec((K * W * C1, W * Cm)),
            _const_spec((1, W * Cm)),
            _const_spec((K * W * Cm, W * C2)),
            _const_spec((1, W * C2)),
        ],
        out_specs=pl.BlockSpec((B_blk, H, W * C2), lambda b: (b, 0, 0)),
        compiler_params=pltpu.CompilerParams(
            dimension_semantics=("parallel",)),
    )(x_flat, w1_cat, b1_flat, w2_cat, b2_flat)

    return out_flat.reshape(N, H, W, C2)


def bottleneck_forward(x_nhwc, params, shortcut=True):
    return bottleneck_pallas(x_nhwc, params, shortcut=shortcut)


# ----------------------------------------------------------------------------
# Parameter construction (deterministic, synthetic) — eval-mode BN folding
# ----------------------------------------------------------------------------
def fold_bn(gamma, beta, mean, var, eps=1e-5):
    scale = gamma / jnp.sqrt(var + eps)
    bias = beta - mean * scale
    return scale, bias


def init_bottleneck_params(key, c1, c2, k=(3, 3), e=0.5):
    c_ = int(c2 * e)
    keys = jax.random.split(key, 10)
    w1 = jax.random.normal(keys[0], (k[0], k[0], c1, c_), jnp.float32) * 0.1
    w2 = jax.random.normal(keys[1], (k[1], k[1], c_, c2), jnp.float32) * 0.1
    g1 = 1.0 + 0.1 * jax.random.normal(keys[2], (c_,), jnp.float32)
    b1 = 0.1 * jax.random.normal(keys[3], (c_,), jnp.float32)
    m1 = 0.1 * jax.random.normal(keys[4], (c_,), jnp.float32)
    v1 = jax.random.uniform(keys[5], (c_,), jnp.float32, 0.5, 1.5)
    g2 = 1.0 + 0.1 * jax.random.normal(keys[6], (c2,), jnp.float32)
    b2 = 0.1 * jax.random.normal(keys[7], (c2,), jnp.float32)
    m2 = 0.1 * jax.random.normal(keys[8], (c2,), jnp.float32)
    v2 = jax.random.uniform(keys[9], (c2,), jnp.float32, 0.5, 1.5)
    s1, bb1 = fold_bn(g1, b1, m1, v1)
    s2, bb2 = fold_bn(g2, b2, m2, v2)
    return {"w1": w1, "s1": s1, "b1": bb1, "w2": w2, "s2": s2, "b2": bb2}


# ----------------------------------------------------------------------------
# Pure-JAX reference (correctness check)
# ----------------------------------------------------------------------------
def _ref_conv_bn_silu(x, w, scale, bias):
    y = jax.lax.conv_general_dilated(
        x, w, window_strides=(1, 1), padding="SAME",
        dimension_numbers=("NHWC", "HWIO", "NHWC"))
    y = y * scale + bias
    return y * jax.nn.sigmoid(y)


def _ref_bottleneck(x, params, shortcut=True):
    c1 = x.shape[-1]
    c2 = params["w2"].shape[3]
    y = _ref_conv_bn_silu(x, params["w1"], params["s1"], params["b1"])
    y = _ref_conv_bn_silu(y, params["w2"], params["s2"], params["b2"])
    return x + y if (shortcut and c1 == c2) else y


if __name__ == "__main__":
    key = jax.random.PRNGKey(0)
    k_x, k_p = jax.random.split(key)

    # PyTorch-style input: N=2, C1=8, H=W=16 (NCHW); c2=8, e=0.5 -> c_=4
    N, C1, H, W = 2, 8, 16, 16
    C2 = 8
    x_nchw = jax.random.normal(k_x, (N, C1, H, W), jnp.float32)
    x_nhwc = jnp.transpose(x_nchw, (0, 2, 3, 1))     # NHWC for the kernel

    params = init_bottleneck_params(k_p, C1, C2, k=(3, 3), e=0.5)

    out = bottleneck_forward(x_nhwc, params, shortcut=True)
    out = jax.block_until_ready(out)

    ref = _ref_bottleneck(x_nhwc, params, shortcut=True)
    assert out.shape == (N, H, W, C2)
    max_err = float(jnp.max(jnp.abs(out - ref)))
    # bf16 matmul operands with f32 accumulation -> relaxed tolerance.
    assert jnp.allclose(out, ref, atol=2e-2, rtol=2e-2), (
        f"mismatch vs reference (max abs err {max_err:.4e})")

    print("KERNEL_OK")
</pallas_src>

<mosaic_0001>
module attributes {stable_mosaic.version = 11 : i64} {
  func.func @_bottleneck_kernel(%arg0: i32, %arg1: memref<2x16x128xf32, #tpu.memory_space<vmem>>, %arg2: memref<384x128xbf16, #tpu.memory_space<vmem>>, %arg3: memref<1x128xf32, #tpu.memory_space<vmem>>, %arg4: memref<384x128xbf16, #tpu.memory_space<vmem>>, %arg5: memref<1x128xf32, #tpu.memory_space<vmem>>, %arg6: memref<2x16x128xf32, #tpu.memory_space<vmem>>) attributes {dimension_semantics = [#tpu.dimension_semantics<parallel>], iteration_bounds = array<i64: 1>, scalar_prefetch = 0 : i64, scratch_operands = 0 : i64, tpu.core_type = #tpu.core_type<tc>, window_params = [{transform_indices = @transform_0, window_bounds = array<i64: 2, 16, 128>}, {pipeline_mode = #tpu.pipeline_mode<synchronous>, transform_indices = @transform_1, window_bounds = array<i64: 384, 128>}, {pipeline_mode = #tpu.pipeline_mode<synchronous>, transform_indices = @transform_2, window_bounds = array<i64: 1, 128>}, {pipeline_mode = #tpu.pipeline_mode<synchronous>, transform_indices = @transform_3, window_bounds = array<i64: 384, 128>}, {pipeline_mode = #tpu.pipeline_mode<synchronous>, transform_indices = @transform_4, window_bounds = array<i64: 1, 128>}, {transform_indices = @transform_5, window_bounds = array<i64: 2, 16, 128>}]} {
    %c0 = arith.constant 0 : index
    %c0_0 = arith.constant 0 : index
    %c0_1 = arith.constant 0 : index
    %0 = vector.load %arg1[%c0, %c0_0, %c0_1] : memref<2x16x128xf32, #tpu.memory_space<vmem>>, vector<2x16x128xf32>
    %cst = arith.constant 0.000000e+00 : f32
    %1 = vector.broadcast %cst : f32 to vector<2x1x128xf32>
    %2 = vector.extract_strided_slice %0 {offsets = [0, 0, 0], sizes = [2, 15, 128], strides = [1, 1, 1]} : vector<2x16x128xf32> to vector<2x15x128xf32>
    %3 = tpu.concatenate %1, %2 in 1 : vector<2x1x128xf32>, vector<2x15x128xf32> -> vector<2x16x128xf32>
    %cst_2 = arith.constant 0.000000e+00 : f32
    %4 = vector.broadcast %cst_2 : f32 to vector<2x1x128xf32>
    %5 = vector.extract_strided_slice %0 {offsets = [0, 1, 0], sizes = [2, 15, 128], strides = [1, 1, 1]} : vector<2x16x128xf32> to vector<2x15x128xf32>
    %6 = tpu.concatenate %5, %4 in 1 : vector<2x15x128xf32>, vector<2x1x128xf32> -> vector<2x16x128xf32>
    %7 = tpu.concatenate %3, %0, %6 in 2 : vector<2x16x128xf32>, vector<2x16x128xf32>, vector<2x16x128xf32> -> vector<2x16x384xf32>
    %8 = vector.shape_cast %7 : vector<2x16x384xf32> to vector<32x384xf32>
    %9 = arith.truncf %8 : vector<32x384xf32> to vector<32x384xbf16>
    %c0_3 = arith.constant 0 : index
    %c0_4 = arith.constant 0 : index
    %10 = vector.load %arg2[%c0_3, %c0_4] : memref<384x128xbf16, #tpu.memory_space<vmem>>, vector<384x128xbf16>
    %cst_5 = arith.constant dense<0.000000e+00> : vector<32x128xf32>
    %11 = tpu.matmul %9, %10, %cst_5 {dimension_numbers = #tpu.dot_dimension_numbers<[1], [0], [0], [1], [0, 0, 1, 1], [], []>} : vector<32x384xbf16>, vector<384x128xbf16>, vector<32x128xf32> -> vector<32x128xf32>
    %c0_6 = arith.constant 0 : index
    %c0_7 = arith.constant 0 : index
    %12 = vector.load %arg3[%c0_6, %c0_7] : memref<1x128xf32, #tpu.memory_space<vmem>>, vector<1x128xf32>
    %13 = vector.broadcast %12 : vector<1x128xf32> to vector<32x128xf32>
    %14 = arith.addf %11, %13 : vector<32x128xf32>
    %15 = arith.negf %14 : vector<32x128xf32>
    %16 = math.exp %15 : vector<32x128xf32>
    %cst_8 = arith.constant 1.000000e+00 : f32
    %17 = vector.broadcast %cst_8 : f32 to vector<32x128xf32>
    %18 = arith.addf %17, %16 : vector<32x128xf32>
    %19 = arith.divf %17, %18 : vector<32x128xf32>
    %20 = arith.mulf %14, %19 : vector<32x128xf32>
    %21 = vector.shape_cast %20 : vector<32x128xf32> to vector<2x16x128xf32>
    %cst_9 = arith.constant 0.000000e+00 : f32
    %22 = vector.broadcast %cst_9 : f32 to vector<2x1x128xf32>
    %23 = vector.extract_strided_slice %21 {offsets = [0, 0, 0], sizes = [2, 15, 128], strides = [1, 1, 1]} : vector<2x16x128xf32> to vector<2x15x128xf32>
    %24 = tpu.concatenate %22, %23 in 1 : vector<2x1x128xf32>, vector<2x15x128xf32> -> vector<2x16x128xf32>
    %cst_10 = arith.constant 0.000000e+00 : f32
    %25 = vector.broadcast %cst_10 : f32 to vector<2x1x128xf32>
    %26 = vector.extract_strided_slice %21 {offsets = [0, 1, 0], sizes = [2, 15, 128], strides = [1, 1, 1]} : vector<2x16x128xf32> to vector<2x15x128xf32>
    %27 = tpu.concatenate %26, %25 in 1 : vector<2x15x128xf32>, vector<2x1x128xf32> -> vector<2x16x128xf32>
    %28 = tpu.concatenate %24, %21, %27 in 2 : vector<2x16x128xf32>, vector<2x16x128xf32>, vector<2x16x128xf32> -> vector<2x16x384xf32>
    %29 = vector.shape_cast %28 : vector<2x16x384xf32> to vector<32x384xf32>
    %30 = arith.truncf %29 : vector<32x384xf32> to vector<32x384xbf16>
    %c0_11 = arith.constant 0 : index
    %c0_12 = arith.constant 0 : index
    %31 = vector.load %arg4[%c0_11, %c0_12] : memref<384x128xbf16, #tpu.memory_space<vmem>>, vector<384x128xbf16>
    %cst_13 = arith.constant dense<0.000000e+00> : vector<32x128xf32>
    %32 = tpu.matmul %30, %31, %cst_13 {dimension_numbers = #tpu.dot_dimension_numbers<[1], [0], [0], [1], [0, 0, 1, 1], [], []>} : vector<32x384xbf16>, vector<384x128xbf16>, vector<32x128xf32> -> vector<32x128xf32>
    %c0_14 = arith.constant 0 : index
    %c0_15 = arith.constant 0 : index
    %33 = vector.load %arg5[%c0_14, %c0_15] : memref<1x128xf32, #tpu.memory_space<vmem>>, vector<1x128xf32>
    %34 = vector.broadcast %33 : vector<1x128xf32> to vector<32x128xf32>
    %35 = arith.addf %32, %34 : vector<32x128xf32>
    %36 = arith.negf %35 : vector<32x128xf32>
    %37 = math.exp %36 : vector<32x128xf32>
    %cst_16 = arith.constant 1.000000e+00 : f32
    %38 = vector.broadcast %cst_16 : f32 to vector<32x128xf32>
    %39 = arith.addf %38, %37 : vector<32x128xf32>
    %40 = arith.divf %38, %39 : vector<32x128xf32>
    %41 = arith.mulf %35, %40 : vector<32x128xf32>
    %42 = vector.shape_cast %0 : vector<2x16x128xf32> to vector<32x128xf32>
    %43 = arith.addf %41, %42 : vector<32x128xf32>
    %44 = vector.shape_cast %43 : vector<32x128xf32> to vector<2x16x128xf32>
    %c0_17 = arith.constant 0 : index
    %c0_18 = arith.constant 0 : index
    %c0_19 = arith.constant 0 : index
    %45 = vector.load %arg6[%c0_17, %c0_18, %c0_19] : memref<2x16x128xf32, #tpu.memory_space<vmem>>, vector<2x16x128xf32>
    tpu.vector_store %arg6[%c0_17, %c0_18, %c0_19], %44 {strides = array<i32>} : memref<2x16x128xf32, #tpu.memory_space<vmem>>, vector<2x16x128xf32>,
    return
  }
  func.func @transform_0(%arg0: i32) -> (i32, i32, i32) {
    %c0_i32 = arith.constant 0 : i32
    %c0_i32_0 = arith.constant 0 : i32
    %c0_i32_1 = arith.constant 0 : i32
    return %arg0, %c0_i32, %c0_i32_0 : i32, i32, i32
  }
  func.func @transform_1(%arg0: i32) -> (i32, i32) {
    %c0_i32 = arith.constant 0 : i32
    %c0_i32_0 = arith.constant 0 : i32
    %c0_i32_1 = arith.constant 0 : i32
    return %c0_i32, %c0_i32_0 : i32, i32
  }
  func.func @transform_2(%arg0: i32) -> (i32, i32) {
    %c0_i32 = arith.constant 0 : i32
    %c0_i32_0 = arith.constant 0 : i32
    %c0_i32_1 = arith.constant 0 : i32
    return %c0_i32, %c0_i32_0 : i32, i32
  }
  func.func @transform_3(%arg0: i32) -> (i32, i32) {
    %c0_i32 = arith.constant 0 : i32
    %c0_i32_0 = arith.constant 0 : i32
    %c0_i32_1 = arith.constant 0 : i32
    return %c0_i32, %c0_i32_0 : i32, i32
  }
  func.func @transform_4(%arg0: i32) -> (i32, i32) {
    %c0_i32 = arith.constant 0 : i32
    %c0_i32_0 = arith.constant 0 : i32
    %c0_i32_1 = arith.constant 0 : i32
    return %c0_i32, %c0_i32_0 : i32, i32
  }
  func.func @transform_5(%arg0: i32) -> (i32, i32, i32) {
    %c0_i32 = arith.constant 0 : i32
    %c0_i32_0 = arith.constant 0 : i32
    %c0_i32_1 = arith.constant 0 : i32
    return %arg0, %c0_i32, %c0_i32_0 : i32, i32, i32
  }
}

</mosaic_0001>

<llo_original>
// kernel: tpu_custom_call.1
$region0: #{tpu_custom_call.1}
  #allocation0 [shape = 'u32[]', space=smem, size = 0x4, offset = 0x4, fixed_abs, tag = 'smem constant byte address 0x4 - core index']
  #allocation1 [shape = 'u32[144,128]{1,0:T(1,128)}', space=vmem, size = 0x12000, scoped, tag = 'internal scratch']
  %s0 = inlined_call_operand.hbm [shape: f32[2,16,128], index: 0, kind: input, shape index: {}]
  %s1 = inlined_call_operand.hbm [shape: bf16[384,128], index: 1, kind: input, shape index: {}]
  %s2 = inlined_call_operand.vmem [shape: f32[1,128], index: 2, kind: input, shape index: {}]
  %s3 = inlined_call_operand.hbm [shape: bf16[384,128], index: 3, kind: input, shape index: {}]
  %s4 = inlined_call_operand.vmem [shape: f32[1,128], index: 4, kind: input, shape index: {}]
  %s5 = inlined_call_operand.hbm [shape: f32[2,16,128], index: 5, kind: output, shape index: {}]
  %s6 = sld [smem:[#allocation0]]
  $region42: #{tpu_custom_call.1} parent=0
    _
  %s8 = ssub.s32 1, %s6
  %s9 = scalar_select 0, %s8, %s6
  $region1: #{tpu_custom_call.1} parent=0
    #allocation2 [shape = 'u8[16384]{0}', space=vmem, size = 0x4000, scoped, tag = 'input window, operand 0, single buffered']
    #allocation3 [shape = 's32[1]{0}', space=sflag, size = 0x4, scoped, tag = 'scoped memory for tpu_custom_call.1']
    #allocation4 [shape = 's32[1]{0}', space=sflag, size = 0x4, scoped, tag = 'scoped memory for tpu_custom_call.1']
    #allocation5 [shape = 'u8[98304]{0}', space=vmem, size = 0x18000, scoped, tag = 'input window, operand 1, single buffered']
    #allocation6 [shape = 's32[1]{0}', space=sflag, size = 0x4, scoped, tag = 'scoped memory for tpu_custom_call.1']
    #allocation7 [shape = 'u8[98304]{0}', space=vmem, size = 0x18000, scoped, tag = 'input window, operand 3, single buffered']
    #allocation8 [shape = 'u8[16384]{0}', space=vmem, size = 0x4000, scoped, tag = 'output window, operand 0, single buffered']
    %10 = vsyncpa [#allocation3], 0
    %11 = vsyncpa [#allocation6], 0
    %12 = vsyncpa [#allocation4], 0
    // Predicated region
    $region2: #{tpu_custom_call.1} parent=1 // pred_check
      _
    $region3: #{tpu_custom_call.1} parent=1 // pred_check_branch
      %14 = sbr.rel (0) target = $region5
    $region4: #{tpu_custom_call.1} parent=1 // pred_region
      %s16 = ssub.s32 512, 512
      %17 = vsyncadd [#allocation3], %s16
      %s18 = sshll.u32 [#allocation2], 4
      %s19 = int_to_ptr.vmem [resolvable:$true] %s18
      %24 = dma.hbm_to_vmem [thread:$0]  %s0, 512, %s19, [#allocation3], 128, 128, 8
    $region5: #{tpu_custom_call.1} parent=1 // pred_fallthru
      _
    // Predicated region
    $region6: #{tpu_custom_call.1} parent=1 // pred_check
      _
    $region7: #{tpu_custom_call.1} parent=1 // pred_check_branch
      %26 = sbr.rel (0) target = $region9
    $region8: #{tpu_custom_call.1} parent=1 // pred_region
      %s28 = ssub.s32 3072, 3072
      %29 = vsyncadd [#allocation6], %s28
      %s30 = sshll.u32 [#allocation5], 4
      %s31 = int_to_ptr.vmem [resolvable:$true] %s30
      %36 = dma.hbm_to_vmem [thread:$0]  %s1, 3072, %s31, [#allocation6], 64, 64, 4
    $region9: #{tpu_custom_call.1} parent=1 // pred_fallthru
      _
    // Predicated region
    $region10: #{tpu_custom_call.1} parent=1 // pred_check
      _
    $region11: #{tpu_custom_call.1} parent=1 // pred_check_branch
      %38 = sbr.rel (0) target = $region13
    $region12: #{tpu_custom_call.1} parent=1 // pred_region
      _
    $region13: #{tpu_custom_call.1} parent=1 // pred_fallthru
      _
    // Predicated region
    $region14: #{tpu_custom_call.1} parent=1 // pred_check
      _
    $region15: #{tpu_custom_call.1} parent=1 // pred_check_branch
      %40 = sbr.rel (0) target = $region17
    $region16: #{tpu_custom_call.1} parent=1 // pred_region
      %s42 = ssub.s32 3072, 3072
      %43 = vsyncadd [#allocation6], %s42
      %s44 = sshll.u32 [#allocation7], 4
      %s45 = int_to_ptr.vmem [resolvable:$true] %s44
      %50 = dma.hbm_to_vmem [thread:$0]  %s3, 3072, %s45, [#allocation6], 64, 64, 4
    $region17: #{tpu_custom_call.1} parent=1 // pred_fallthru
      _
    // Predicated region
    $region18: #{tpu_custom_call.1} parent=1 // pred_check
      _
    $region19: #{tpu_custom_call.1} parent=1 // pred_check_branch
      %52 = sbr.rel (0) target = $region21
    $region20: #{tpu_custom_call.1} parent=1 // pred_region
      _
    $region21: #{tpu_custom_call.1} parent=1 // pred_fallthru
      _
    // Predicated region
    $region22: #{tpu_custom_call.1} parent=1 // pred_check
      _
    $region23: #{tpu_custom_call.1} parent=1 // pred_check_branch
      %54 = sbr.rel (0) target = $region25
    $region24: #{tpu_custom_call.1} parent=1 // pred_region
      %55 = dma.done [#allocation3], 512
    $region25: #{tpu_custom_call.1} parent=1 // pred_fallthru
      _
    // Predicated region
    $region26: #{tpu_custom_call.1} parent=1 // pred_check
      _
    $region27: #{tpu_custom_call.1} parent=1 // pred_check_branch
      %57 = sbr.rel (0) target = $region29
    $region28: #{tpu_custom_call.1} parent=1 // pred_region
      %58 = dma.done [#allocation6], 3072
    $region29: #{tpu_custom_call.1} parent=1 // pred_fallthru
      _
    // Predicated region
    $region30: #{tpu_custom_call.1} parent=1 // pred_check
      _
    $region31: #{tpu_custom_call.1} parent=1 // pred_check_branch
      %60 = sbr.rel (0) target = $region33
    $region32: #{tpu_custom_call.1} parent=1 // pred_region
      %61 = dma.done [#allocation6], 3072
    $region33: #{tpu_custom_call.1} parent=1 // pred_fallthru
      _
    %v63 = vld [vmem:[#allocation2] sm:$0xff]
    %v64 = vld [vmem:[#allocation2 + $0x8] sm:$0xff]
    %v65 = vld [vmem:[#allocation2 + $0x10] sm:$0xff]
    %v66 = vld [vmem:[#allocation2 + $0x18] sm:$0xff]
    %vm71 = vcmask 1040384
    %v72 = vrot.slane %v63, 7
    %v73 = vrot.slane %v64, 7
    %v74 = vsel %vm71, %v72, %v73
    %v75 = vrot.slane %v65, 7
    %v76 = vrot.slane %v66, 7
    %v77 = vsel %vm71, %v75, %v76
    %v82 = vsel %vm71, 0.0, %v72
    %v83 = vsel %vm71, 0.0, %v75
    %vm84 = vcmask 1046528
    %v85 = vrot.slane %v63, 1
    %v86 = vrot.slane %v64, 1
    %v87 = vsel %vm84, %v85, %v86
    %v88 = vrot.slane %v65, 1
    %v89 = vrot.slane %v66, 1
    %v90 = vsel %vm84, %v88, %v89
    %v95 = vsel %vm84, %v86, 0.0
    %v96 = vsel %vm84, %v89, 0.0
    %v97 = vpack.c.bf16 %v74, %v82
    %v98 = vpack.c.bf16 %v64, %v63
    %v99 = vpack.c.bf16 %v95, %v87
    %v100 = vpack.c.bf16 %v77, %v83
    %v101 = vpack.c.bf16 %v66, %v65
    %v102 = vpack.c.bf16 %v96, %v90
    %v103 = vld [vmem:[#allocation5] sm:$0xf]
    %v104 = vld [vmem:[#allocation5 + $0x4] sm:$0xf]
    %v105 = vld [vmem:[#allocation5 + $0x8] sm:$0xf]
    %v106 = vld [vmem:[#allocation5 + $0xc] sm:$0xf]
    %v107 = vld [vmem:[#allocation5 + $0x10] sm:$0xf]
    %v108 = vld [vmem:[#allocation5 + $0x14] sm:$0xf]
    %v109 = vld [vmem:[#allocation5 + $0x18] sm:$0xf]
    %v110 = vld [vmem:[#allocation5 + $0x1c] sm:$0xf]
    %v111 = vld [vmem:[#allocation5 + $0x20] sm:$0xf]
    %v112 = vld [vmem:[#allocation5 + $0x24] sm:$0xf]
    %v113 = vld [vmem:[#allocation5 + $0x28] sm:$0xf]
    %v114 = vld [vmem:[#allocation5 + $0x2c] sm:$0xf]
    %v115 = vld [vmem:[#allocation5 + $0x30] sm:$0xf]
    %v116 = vld [vmem:[#allocation5 + $0x34] sm:$0xf]
    %v117 = vld [vmem:[#allocation5 + $0x38] sm:$0xf]
    %v118 = vld [vmem:[#allocation5 + $0x3c] sm:$0xf]
    %v119 = vld [vmem:[#allocation5 + $0x40] sm:$0xf]
    %v120 = vld [vmem:[#allocation5 + $0x44] sm:$0xf]
    %v121 = vld [vmem:[#allocation5 + $0x48] sm:$0xf]
    %v122 = vld [vmem:[#allocation5 + $0x4c] sm:$0xf]
    %v123 = vld [vmem:[#allocation5 + $0x50] sm:$0xf]
    %v124 = vld [vmem:[#allocation5 + $0x54] sm:$0xf]
    %v125 = vld [vmem:[#allocation5 + $0x58] sm:$0xf]
    %v126 = vld [vmem:[#allocation5 + $0x5c] sm:$0xf]
    %v127 = vld [vmem:[#allocation5 + $0x60] sm:$0xf]
    %v128 = vld [vmem:[#allocation5 + $0x64] sm:$0xf]
    %v129 = vld [vmem:[#allocation5 + $0x68] sm:$0xf]
    %v130 = vld [vmem:[#allocation5 + $0x6c] sm:$0xf]
    %v131 = vld [vmem:[#allocation5 + $0x70] sm:$0xf]
    %v132 = vld [vmem:[#allocation5 + $0x74] sm:$0xf]
    %v133 = vld [vmem:[#allocation5 + $0x78] sm:$0xf]
    %v134 = vld [vmem:[#allocation5 + $0x7c] sm:$0xf]
    %v135 = vld [vmem:[#allocation5 + $0x80] sm:$0xf]
    %v136 = vld [vmem:[#allocation5 + $0x84] sm:$0xf]
    %v137 = vld [vmem:[#allocation5 + $0x88] sm:$0xf]
    %v138 = vld [vmem:[#allocation5 + $0x8c] sm:$0xf]
    %v139 = vld [vmem:[#allocation5 + $0x90] sm:$0xf]
    %v140 = vld [vmem:[#allocation5 + $0x94] sm:$0xf]
    %v141 = vld [vmem:[#allocation5 + $0x98] sm:$0xf]
    %v142 = vld [vmem:[#allocation5 + $0x9c] sm:$0xf]
    %v143 = vld [vmem:[#allocation5 + $0xa0] sm:$0xf]
    %v144 = vld [vmem:[#allocation5 + $0xa4] sm:$0xf]
    %v145 = vld [vmem:[#allocation5 + $0xa8] sm:$0xf]
    %v146 = vld [vmem:[#allocation5 + $0xac] sm:$0xf]
    %v147 = vld [vmem:[#allocation5 + $0xb0] sm:$0xf]
    %v148 = vld [vmem:[#allocation5 + $0xb4] sm:$0xf]
    %v149 = vld [vmem:[#allocation5 + $0xb8] sm:$0xf]
    %v150 = vld [vmem:[#allocation5 + $0xbc] sm:$0xf]
    %v151 = vld [vmem:[%s2] sm:$0x1]
    %v153 = vlaneseq
    %v154 = vshrl.u32 %v153, 7
    %v155 = vsub.s32 0, %v154
    %v156 = vrot.slane %v151, %v155
    %v206 = vunpack.c.l.b16 %v103
    %v207 = vunpack.c.l.b16 %v104
    %v208 = vunpack.c.l.b16 %v105
    %v209 = vunpack.c.l.b16 %v106
    %v210 = vunpack.c.l.b16 %v107
    %v211 = vunpack.c.l.b16 %v108
    %v212 = vunpack.c.l.b16 %v109
    %v213 = vunpack.c.l.b16 %v110
    %v214 = vunpack.c.l.b16 %v111
    %v215 = vunpack.c.l.b16 %v112
    %v216 = vunpack.c.l.b16 %v113
    %v217 = vunpack.c.l.b16 %v114
    %v218 = vunpack.c.l.b16 %v115
    %v219 = vunpack.c.l.b16 %v116
    %v220 = vunpack.c.l.b16 %v117
    %v221 = vunpack.c.l.b16 %v118
    %v222 = vunpack.c.l.b16 %v119
    %v223 = vunpack.c.l.b16 %v120
    %v224 = vunpack.c.l.b16 %v121
    %v225 = vunpack.c.l.b16 %v122
    %v226 = vunpack.c.l.b16 %v123
    %v227 = vunpack.c.l.b16 %v124
    %v228 = vunpack.c.l.b16 %v125
    %v229 = vunpack.c.l.b16 %v126
    %v230 = vunpack.c.l.b16 %v127
    %v231 = vunpack.c.l.b16 %v128
    %v232 = vunpack.c.l.b16 %v129
    %v233 = vunpack.c.l.b16 %v130
    %v234 = vunpack.c.l.b16 %v131
    %v235 = vunpack.c.l.b16 %v132
    %v236 = vunpack.c.l.b16 %v133
    %v237 = vunpack.c.l.b16 %v134
    %v238 = vunpack.c.l.b16 %v135
    %v239 = vunpack.c.l.b16 %v136
    %v240 = vunpack.c.l.b16 %v137
    %v241 = vunpack.c.l.b16 %v138
    %v242 = vunpack.c.l.b16 %v139
    %v243 = vunpack.c.l.b16 %v140
    %v244 = vunpack.c.l.b16 %v141
    %v245 = vunpack.c.l.b16 %v142
    %v246 = vunpack.c.l.b16 %v143
    %v247 = vunpack.c.l.b16 %v144
    %v248 = vunpack.c.l.b16 %v145
    %v249 = vunpack.c.l.b16 %v146
    %v250 = vunpack.c.l.b16 %v147
    %v251 = vunpack.c.l.b16 %v148
    %v252 = vunpack.c.l.b16 %v149
    %v253 = vunpack.c.l.b16 %v150
    %v254 = vpack.c.b16 %v207, %v206
    %v255 = vpack.c.b16 %v209, %v208
    %v256 = vpack.c.b16 %v211, %v210
    %v257 = vpack.c.b16 %v213, %v212
    %v258 = vpack.c.b16 %v215, %v214
    %v259 = vpack.c.b16 %v217, %v216
    %v260 = vpack.c.b16 %v219, %v218
    %v261 = vpack.c.b16 %v221, %v220
    %v262 = vpack.c.b16 %v223, %v222
    %v263 = vpack.c.b16 %v225, %v224
    %v264 = vpack.c.b16 %v227, %v226
    %v265 = vpack.c.b16 %v229, %v228
    %v266 = vpack.c.b16 %v231, %v230
    %v267 = vpack.c.b16 %v233, %v232
    %v268 = vpack.c.b16 %v235, %v234
    %v269 = vpack.c.b16 %v237, %v236
    %v270 = vpack.c.b16 %v239, %v238
    %v271 = vpack.c.b16 %v241, %v240
    %v272 = vpack.c.b16 %v243, %v242
    %v273 = vpack.c.b16 %v245, %v244
    %v274 = vpack.c.b16 %v247, %v246
    %v275 = vpack.c.b16 %v249, %v248
    %v276 = vpack.c.b16 %v251, %v250
    %v277 = vpack.c.b16 %v253, %v252
    %302 = vmatprep.subr.bf16.mxu0 0
    %303 = vmatpush1.bf16.msra.mxu0 %v261
    %304 = vmatprep.subr.bf16.mxu0 0
    %305 = vmatpush1.bf16.msra.mxu0 %v260
    %306 = vmatprep.subr.bf16.mxu0 0
    %307 = vmatpush1.bf16.msra.mxu0 %v259
    %308 = vmatprep.subr.bf16.mxu0 0
    %309 = vmatpush1.bf16.msra.mxu0 %v258
    %310 = vmatprep.subr.bf16.mxu0 0
    %311 = vmatpush1.bf16.msra.mxu0 %v257
    %312 = vmatprep.subr.bf16.mxu0 0
    %313 = vmatpush1.bf16.msra.mxu0 %v256
    %314 = vmatprep.subr.bf16.mxu0 0
    %315 = vmatpush1.bf16.msra.mxu0 %v255
    %316 = vmatprep.subr.bf16.mxu0 0
    %317 = vmatpush1.bf16.msra.mxu0 %v254
    %318 = vmatprep.subr.bf16.mxu0 0
    %319 = vmatpush2.bf16.msra.mxu0 %v269
    %320 = vmatprep.subr.bf16.mxu0 0
    %321 = vmatpush2.bf16.msra.mxu0 %v268
    %322 = vmatprep.subr.bf16.mxu0 0
    %323 = vmatpush2.bf16.msra.mxu0 %v267
    %324 = vmatprep.subr.bf16.mxu0 0
    %325 = vmatpush2.bf16.msra.mxu0 %v266
    %326 = vmatprep.subr.bf16.mxu0 0
    %327 = vmatpush2.bf16.msra.mxu0 %v265
    %328 = vmatprep.subr.bf16.mxu0 0
    %329 = vmatpush2.bf16.msra.mxu0 %v264
    %330 = vmatprep.subr.bf16.mxu0 0
    %331 = vmatpush2.bf16.msra.mxu0 %v263
    %332 = vmatprep.subr.bf16.mxu0 0
    %333 = vmatpush2.bf16.msra.mxu0 %v262
    %334 = vmatprep.mubr.bf16.mxu0 %v98
    %335 = vmatmul.mubr.bf16.gmra.mxu0 %v97
    %v336 = vpop.f32.mrf.mxu0
    %v337 = vadd.f32 %v156, %v336
    %v338 = vpop.f32.mrf.mxu0
    %v339 = vpop.f32.mrf.mxu0
    %v340 = vadd.f32 %v156, %v339
    %v341 = vpop.f32.mrf.mxu0
    %342 = vmatprep.mubr.bf16.mxu0 %v101
    %343 = vmatmul.mubr.bf16.gmra.mxu0 %v100
    %v344 = vpop.f32.mrf.mxu0
    %v345 = vadd.f32 %v156, %v344
    %v346 = vpop.f32.mrf.mxu0
    %v347 = vpop.f32.mrf.mxu0
    %v348 = vadd.f32 %v156, %v347
    %v349 = vpop.f32.mrf.mxu0
    %350 = vdwg.mxu0
    %351 = vmatprep.subr.bf16.mxu0 0
    %352 = vmatpush1.bf16.msra.mxu0 %v277
    %353 = vmatprep.subr.bf16.mxu0 0
    %354 = vmatpush1.bf16.msra.mxu0 %v276
    %355 = vmatprep.subr.bf16.mxu0 0
    %356 = vmatpush1.bf16.msra.mxu0 %v275
    %357 = vmatprep.subr.bf16.mxu0 0
    %358 = vmatpush1.bf16.msra.mxu0 %v274
    %359 = vmatprep.subr.bf16.mxu0 0
    %360 = vmatpush1.bf16.msra.mxu0 %v273
    %361 = vmatprep.subr.bf16.mxu0 0
    %362 = vmatpush1.bf16.msra.mxu0 %v272
    %363 = vmatprep.subr.bf16.mxu0 0
    %364 = vmatpush1.bf16.msra.mxu0 %v271
    %365 = vmatprep.subr.bf16.mxu0 0
    %366 = vmatpush1.bf16.msra.mxu0 %v270
    %367 = vmatprep.subr.bf16.mxu0 0
    %368 = vmatpush2.bf16.msra.mxu0 0
    %369 = vmatprep.subr.bf16.mxu0 0
    %370 = vmatpush2.bf16.msra.mxu0 0
    %371 = vmatprep.subr.bf16.mxu0 0
    %372 = vmatpush2.bf16.msra.mxu0 0
    %373 = vmatprep.subr.bf16.mxu0 0
    %374 = vmatpush2.bf16.msra.mxu0 0
    %375 = vmatprep.subr.bf16.mxu0 0
    %376 = vmatpush2.bf16.msra.mxu0 0
    %377 = vmatprep.subr.bf16.mxu0 0
    %378 = vmatpush2.bf16.msra.mxu0 0
    %379 = vmatprep.subr.bf16.mxu0 0
    %380 = vmatpush2.bf16.msra.mxu0 0
    %381 = vmatprep.subr.bf16.mxu0 0
    %382 = vmatpush2.bf16.msra.mxu0 0
    %383 = vmatprep.mubr.bf16.mxu0 0
    %384 = vmatmul.mubr.bf16.gmra.mxu0 %v99
    %v385 = vpop.f32.mrf.mxu0
    %v386 = vadd.f32 %v337, %v385
    %v387 = vpop.f32.mrf.mxu0
    %v388 = vpop.f32.mrf.mxu0
    %v389 = vadd.f32 %v340, %v388
    %v390 = vpop.f32.mrf.mxu0
    %391 = vmatprep.mubr.bf16.mxu0 0
    %392 = vmatmul.mubr.bf16.gmra.mxu0 %v102
    %v393 = vpop.f32.mrf.mxu0
    %v394 = vadd.f32 %v345, %v393
    %v395 = vpop.f32.mrf.mxu0
    %v396 = vpop.f32.mrf.mxu0
    %v397 = vadd.f32 %v348, %v396
    %v398 = vpop.f32.mrf.mxu0
    %399 = vdwg.mxu0
    %v400 = vxor.u32 %v386, 2147483648
    %v401 = vxor.u32 %v389, 2147483648
    %v402 = vxor.u32 %v394, 2147483648
    %v403 = vxor.u32 %v397, 2147483648
    %v404 = vmul.f32 %v400, 1.442695
    %v405 = vpow.pop %v404
    %v406 = vmul.f32 %v401, 1.442695
    %v407 = vpow.pop %v406
    %v408 = vmul.f32 %v402, 1.442695
    %v409 = vpow.pop %v408
    %v410 = vmul.f32 %v403, 1.442695
    %v411 = vpow.pop %v410
    %v412 = vadd.f32 %v405, 1.0
    %v413 = vadd.f32 %v407, 1.0
    %v414 = vadd.f32 %v409, 1.0
    %v415 = vadd.f32 %v411, 1.0
    %v416 = vrcp.pop %v412
    %v417 = vmul.f32 1.0, %v416
    %v418 = vrcp.pop %v413
    %v419 = vmul.f32 1.0, %v418
    %v420 = vrcp.pop %v414
    %v421 = vmul.f32 1.0, %v420
    %v422 = vrcp.pop %v415
    %v423 = vmul.f32 1.0, %v422
    %v424 = vmul.f32 %v386, %v417
    %v425 = vmul.f32 %v389, %v419
    %v426 = vmul.f32 %v394, %v421
    %v427 = vmul.f32 %v397, %v423
    %v432 = vrot.slane %v424, 7
    %v433 = vrot.slane %v425, 7
    %v434 = vsel %vm71, %v432, %v433
    %v435 = vrot.slane %v426, 7
    %v436 = vrot.slane %v427, 7
    %v437 = vsel %vm71, %v435, %v436
    %v442 = vsel %vm71, 0.0, %v432
    %v443 = vsel %vm71, 0.0, %v435
    %v444 = vrot.slane %v424, 1
    %v445 = vrot.slane %v425, 1
    %v446 = vsel %vm84, %v444, %v445
    %v447 = vrot.slane %v426, 1
    %v448 = vrot.slane %v427, 1
    %v449 = vsel %vm84, %v447, %v448
    %v454 = vsel %vm84, %v445, 0.0
    %v455 = vsel %vm84, %v448, 0.0
    %v456 = vpack.c.bf16 %v434, %v442
    %v457 = vpack.c.bf16 %v425, %v424
    %v458 = vpack.c.bf16 %v454, %v446
    %v459 = vpack.c.bf16 %v437, %v443
    %v460 = vpack.c.bf16 %v427, %v426
    %v461 = vpack.c.bf16 %v455, %v449
    %v462 = vld [vmem:[#allocation7] sm:$0xf]
    %v463 = vld [vmem:[#allocation7 + $0x4] sm:$0xf]
    %v464 = vld [vmem:[#allocation7 + $0x8] sm:$0xf]
    %v465 = vld [vmem:[#allocation7 + $0xc] sm:$0xf]
    %v466 = vld [vmem:[#allocation7 + $0x10] sm:$0xf]
    %v467 = vld [vmem:[#allocation7 + $0x14] sm:$0xf]
    %v468 = vld [vmem:[#allocation7 + $0x18] sm:$0xf]
    %v469 = vld [vmem:[#allocation7 + $0x1c] sm:$0xf]
    %v470 = vld [vmem:[#allocation7 + $0x20] sm:$0xf]
    %v471 = vld [vmem:[#allocation7 + $0x24] sm:$0xf]
    %v472 = vld [vmem:[#allocation7 + $0x28] sm:$0xf]
    %v473 = vld [vmem:[#allocation7 + $0x2c] sm:$0xf]
    %v474 = vld [vmem:[#allocation7 + $0x30] sm:$0xf]
    %v475 = vld [vmem:[#allocation7 + $0x34] sm:$0xf]
    %v476 = vld [vmem:[#allocation7 + $0x38] sm:$0xf]
    %v477 = vld [vmem:[#allocation7 + $0x3c] sm:$0xf]
    %v478 = vld [vmem:[#allocation7 + $0x40] sm:$0xf]
    %v479 = vld [vmem:[#allocation7 + $0x44] sm:$0xf]
    %v480 = vld [vmem:[#allocation7 + $0x48] sm:$0xf]
    %v481 = vld [vmem:[#allocation7 + $0x4c] sm:$0xf]
    %v482 = vld [vmem:[#allocation7 + $0x50] sm:$0xf]
    %v483 = vld [vmem:[#allocation7 + $0x54] sm:$0xf]
    %v484 = vld [vmem:[#allocation7 + $0x58] sm:$0xf]
    %v485 = vld [vmem:[#allocation7 + $0x5c] sm:$0xf]
    %v486 = vld [vmem:[#allocation7 + $0x60] sm:$0xf]
    %v487 = vld [vmem:[#allocation7 + $0x64] sm:$0xf]
    %v488 = vld [vmem:[#allocation7 + $0x68] sm:$0xf]
    %v489 = vld [vmem:[#allocation7 + $0x6c] sm:$0xf]
    %v490 = vld [vmem:[#allocation7 + $0x70] sm:$0xf]
    %v491 = vld [vmem:[#allocation7 + $0x74] sm:$0xf]
    %v492 = vld [vmem:[#allocation7 + $0x78] sm:$0xf]
    %v493 = vld [vmem:[#allocation7 + $0x7c] sm:$0xf]
    %v494 = vld [vmem:[#allocation7 + $0x80] sm:$0xf]
    %v495 = vld [vmem:[#allocation7 + $0x84] sm:$0xf]
    %v496 = vld [vmem:[#allocation7 + $0x88] sm:$0xf]
    %v497 = vld [vmem:[#allocation7 + $0x8c] sm:$0xf]
    %v498 = vld [vmem:[#allocation7 + $0x90] sm:$0xf]
    %v499 = vld [vmem:[#allocation7 + $0x94] sm:$0xf]
    %v500 = vld [vmem:[#allocation7 + $0x98] sm:$0xf]
    %v501 = vld [vmem:[#allocation7 + $0x9c] sm:$0xf]
    %v502 = vld [vmem:[#allocation7 + $0xa0] sm:$0xf]
    %v503 = vld [vmem:[#allocation7 + $0xa4] sm:$0xf]
    %v504 = vld [vmem:[#allocation7 + $0xa8] sm:$0xf]
    %v505 = vld [vmem:[#allocation7 + $0xac] sm:$0xf]
    %v506 = vld [vmem:[#allocation7 + $0xb0] sm:$0xf]
    %v507 = vld [vmem:[#allocation7 + $0xb4] sm:$0xf]
    %v508 = vld [vmem:[#allocation7 + $0xb8] sm:$0xf]
    %v509 = vld [vmem:[#allocation7 + $0xbc] sm:$0xf]
    %v510 = vld [vmem:[%s4] sm:$0x1]
    %v512 = vlaneseq
    %v513 = vshrl.u32 %v512, 7
    %v514 = vsub.s32 0, %v513
    %v515 = vrot.slane %v510, %v514
    %v565 = vunpack.c.l.b16 %v462
    %v566 = vunpack.c.l.b16 %v463
    %v567 = vunpack.c.l.b16 %v464
    %v568 = vunpack.c.l.b16 %v465
    %v569 = vunpack.c.l.b16 %v466
    %v570 = vunpack.c.l.b16 %v467
    %v571 = vunpack.c.l.b16 %v468
    %v572 = vunpack.c.l.b16 %v469
    %v573 = vunpack.c.l.b16 %v470
    %v574 = vunpack.c.l.b16 %v471
    %v575 = vunpack.c.l.b16 %v472
    %v576 = vunpack.c.l.b16 %v473
    %v577 = vunpack.c.l.b16 %v474
    %v578 = vunpack.c.l.b16 %v475
    %v579 = vunpack.c.l.b16 %v476
    %v580 = vunpack.c.l.b16 %v477
    %v581 = vunpack.c.l.b16 %v478
    %v582 = vunpack.c.l.b16 %v479
    %v583 = vunpack.c.l.b16 %v480
    %v584 = vunpack.c.l.b16 %v481
    %v585 = vunpack.c.l.b16 %v482
    %v586 = vunpack.c.l.b16 %v483
    %v587 = vunpack.c.l.b16 %v484
    %v588 = vunpack.c.l.b16 %v485
    %v589 = vunpack.c.l.b16 %v486
    %v590 = vunpack.c.l.b16 %v487
    %v591 = vunpack.c.l.b16 %v488
    %v592 = vunpack.c.l.b16 %v489
    %v593 = vunpack.c.l.b16 %v490
    %v594 = vunpack.c.l.b16 %v491
    %v595 = vunpack.c.l.b16 %v492
    %v596 = vunpack.c.l.b16 %v493
    %v597 = vunpack.c.l.b16 %v494
    %v598 = vunpack.c.l.b16 %v495
    %v599 = vunpack.c.l.b16 %v496
    %v600 = vunpack.c.l.b16 %v497
    %v601 = vunpack.c.l.b16 %v498
    %v602 = vunpack.c.l.b16 %v499
    %v603 = vunpack.c.l.b16 %v500
    %v604 = vunpack.c.l.b16 %v501
    %v605 = vunpack.c.l.b16 %v502
    %v606 = vunpack.c.l.b16 %v503
    %v607 = vunpack.c.l.b16 %v504
    %v608 = vunpack.c.l.b16 %v505
    %v609 = vunpack.c.l.b16 %v506
    %v610 = vunpack.c.l.b16 %v507
    %v611 = vunpack.c.l.b16 %v508
    %v612 = vunpack.c.l.b16 %v509
    %v613 = vpack.c.b16 %v566, %v565
    %v614 = vpack.c.b16 %v568, %v567
    %v615 = vpack.c.b16 %v570, %v569
    %v616 = vpack.c.b16 %v572, %v571
    %v617 = vpack.c.b16 %v574, %v573
    %v618 = vpack.c.b16 %v576, %v575
    %v619 = vpack.c.b16 %v578, %v577
    %v620 = vpack.c.b16 %v580, %v579
    %v621 = vpack.c.b16 %v582, %v581
    %v622 = vpack.c.b16 %v584, %v583
    %v623 = vpack.c.b16 %v586, %v585
    %v624 = vpack.c.b16 %v588, %v587
    %v625 = vpack.c.b16 %v590, %v589
    %v626 = vpack.c.b16 %v592, %v591
    %v627 = vpack.c.b16 %v594, %v593
    %v628 = vpack.c.b16 %v596, %v595
    %v629 = vpack.c.b16 %v598, %v597
    %v630 = vpack.c.b16 %v600, %v599
    %v631 = vpack.c.b16 %v602, %v601
    %v632 = vpack.c.b16 %v604, %v603
    %v633 = vpack.c.b16 %v606, %v605
    %v634 = vpack.c.b16 %v608, %v607
    %v635 = vpack.c.b16 %v610, %v609
    %v636 = vpack.c.b16 %v612, %v611
    %661 = vmatprep.subr.bf16.mxu0 0
    %662 = vmatpush1.bf16.msra.mxu0 %v620
    %663 = vmatprep.subr.bf16.mxu0 0
    %664 = vmatpush1.bf16.msra.mxu0 %v619
    %665 = vmatprep.subr.bf16.mxu0 0
    %666 = vmatpush1.bf16.msra.mxu0 %v618
    %667 = vmatprep.subr.bf16.mxu0 0
    %668 = vmatpush1.bf16.msra.mxu0 %v617
    %669 = vmatprep.subr.bf16.mxu0 0
    %670 = vmatpush1.bf16.msra.mxu0 %v616
    %671 = vmatprep.subr.bf16.mxu0 0
    %672 = vmatpush1.bf16.msra.mxu0 %v615
    %673 = vmatprep.subr.bf16.mxu0 0
    %674 = vmatpush1.bf16.msra.mxu0 %v614
    %675 = vmatprep.subr.bf16.mxu0 0
    %676 = vmatpush1.bf16.msra.mxu0 %v613
    %677 = vmatprep.subr.bf16.mxu0 0
    %678 = vmatpush2.bf16.msra.mxu0 %v628
    %679 = vmatprep.subr.bf16.mxu0 0
    %680 = vmatpush2.bf16.msra.mxu0 %v627
    %681 = vmatprep.subr.bf16.mxu0 0
    %682 = vmatpush2.bf16.msra.mxu0 %v626
    %683 = vmatprep.subr.bf16.mxu0 0
    %684 = vmatpush2.bf16.msra.mxu0 %v625
    %685 = vmatprep.subr.bf16.mxu0 0
    %686 = vmatpush2.bf16.msra.mxu0 %v624
    %687 = vmatprep.subr.bf16.mxu0 0
    %688 = vmatpush2.bf16.msra.mxu0 %v623
    %689 = vmatprep.subr.bf16.mxu0 0
    %690 = vmatpush2.bf16.msra.mxu0 %v622
    %691 = vmatprep.subr.bf16.mxu0 0
    %692 = vmatpush2.bf16.msra.mxu0 %v621
    %693 = vmatprep.mubr.bf16.mxu0 %v457
    %694 = vmatmul.mubr.bf16.gmra.mxu0 %v456
    %v695 = vpop.f32.mrf.mxu0
    %v696 = vadd.f32 %v515, %v695
    %v697 = vpop.f32.mrf.mxu0
    %v698 = vpop.f32.mrf.mxu0
    %v699 = vadd.f32 %v515, %v698
    %v700 = vpop.f32.mrf.mxu0
    %701 = vmatprep.mubr.bf16.mxu0 %v460
    %702 = vmatmul.mubr.bf16.gmra.mxu0 %v459
    %v703 = vpop.f32.mrf.mxu0
    %v704 = vadd.f32 %v515, %v703
    %v705 = vpop.f32.mrf.mxu0
    %v706 = vpop.f32.mrf.mxu0
    %v707 = vadd.f32 %v515, %v706
    %v708 = vpop.f32.mrf.mxu0
    %709 = vdwg.mxu0
    %710 = vmatprep.subr.bf16.mxu0 0
    %711 = vmatpush1.bf16.msra.mxu0 %v636
    %712 = vmatprep.subr.bf16.mxu0 0
    %713 = vmatpush1.bf16.msra.mxu0 %v635
    %714 = vmatprep.subr.bf16.mxu0 0
    %715 = vmatpush1.bf16.msra.mxu0 %v634
    %716 = vmatprep.subr.bf16.mxu0 0
    %717 = vmatpush1.bf16.msra.mxu0 %v633
    %718 = vmatprep.subr.bf16.mxu0 0
    %719 = vmatpush1.bf16.msra.mxu0 %v632
    %720 = vmatprep.subr.bf16.mxu0 0
    %721 = vmatpush1.bf16.msra.mxu0 %v631
    %722 = vmatprep.subr.bf16.mxu0 0
    %723 = vmatpush1.bf16.msra.mxu0 %v630
    %724 = vmatprep.subr.bf16.mxu0 0
    %725 = vmatpush1.bf16.msra.mxu0 %v629
    %726 = vmatprep.subr.bf16.mxu0 0
    %727 = vmatpush2.bf16.msra.mxu0 0
    %728 = vmatprep.subr.bf16.mxu0 0
    %729 = vmatpush2.bf16.msra.mxu0 0
    %730 = vmatprep.subr.bf16.mxu0 0
    %731 = vmatpush2.bf16.msra.mxu0 0
    %732 = vmatprep.subr.bf16.mxu0 0
    %733 = vmatpush2.bf16.msra.mxu0 0
    %734 = vmatprep.subr.bf16.mxu0 0
    %735 = vmatpush2.bf16.msra.mxu0 0
    %736 = vmatprep.subr.bf16.mxu0 0
    %737 = vmatpush2.bf16.msra.mxu0 0
    %738 = vmatprep.subr.bf16.mxu0 0
    %739 = vmatpush2.bf16.msra.mxu0 0
    %740 = vmatprep.subr.bf16.mxu0 0
    %741 = vmatpush2.bf16.msra.mxu0 0
    %742 = vmatprep.mubr.bf16.mxu0 0
    %743 = vmatmul.mubr.bf16.gmra.mxu0 %v458
    %v744 = vpop.f32.mrf.mxu0
    %v745 = vadd.f32 %v696, %v744
    %v746 = vpop.f32.mrf.mxu0
    %v747 = vpop.f32.mrf.mxu0
    %v748 = vadd.f32 %v699, %v747
    %v749 = vpop.f32.mrf.mxu0
    %750 = vmatprep.mubr.bf16.mxu0 0
    %751 = vmatmul.mubr.bf16.gmra.mxu0 %v461
    %v752 = vpop.f32.mrf.mxu0
    %v753 = vadd.f32 %v704, %v752
    %v754 = vpop.f32.mrf.mxu0
    %v755 = vpop.f32.mrf.mxu0
    %v756 = vadd.f32 %v707, %v755
    %v757 = vpop.f32.mrf.mxu0
    %758 = vdwg.mxu0
    %v759 = vxor.u32 %v745, 2147483648
    %v760 = vxor.u32 %v748, 2147483648
    %v761 = vxor.u32 %v753, 2147483648
    %v762 = vxor.u32 %v756, 2147483648
    %v763 = vmul.f32 %v759, 1.442695
    %v764 = vpow.pop %v763
    %v765 = vmul.f32 %v760, 1.442695
    %v766 = vpow.pop %v765
    %v767 = vmul.f32 %v761, 1.442695
    %v768 = vpow.pop %v767
    %v769 = vmul.f32 %v762, 1.442695
    %v770 = vpow.pop %v769
    %v771 = vadd.f32 %v764, 1.0
    %v772 = vadd.f32 %v766, 1.0
    %v773 = vadd.f32 %v768, 1.0
    %v774 = vadd.f32 %v770, 1.0
    %v775 = vrcp.pop %v771
    %v776 = vmul.f32 1.0, %v775
    %v777 = vrcp.pop %v772
    %v778 = vmul.f32 1.0, %v777
    %v779 = vrcp.pop %v773
    %v780 = vmul.f32 1.0, %v779
    %v781 = vrcp.pop %v774
    %v782 = vmul.f32 1.0, %v781
    %v783 = vmul.f32 %v745, %v776
    %v784 = vmul.f32 %v748, %v778
    %v785 = vmul.f32 %v753, %v780
    %v786 = vmul.f32 %v756, %v782
    %v787 = vadd.f32 %v783, %v63
    %v788 = vadd.f32 %v784, %v64
    %v789 = vadd.f32 %v785, %v65
    %v790 = vadd.f32 %v786, %v66
    %791 = vst [vmem:[#allocation8] sm:$0xff] %v787
    %792 = vst [vmem:[#allocation8 + $0x8] sm:$0xff] %v788
    %793 = vst [vmem:[#allocation8 + $0x10] sm:$0xff] %v789
    %794 = vst [vmem:[#allocation8 + $0x18] sm:$0xff] %v790
    // Predicated region
    $region34: #{tpu_custom_call.1} parent=1 // pred_check
      _
    $region35: #{tpu_custom_call.1} parent=1 // pred_check_branch
      %796 = sbr.rel (0) target = $region37
    $region36: #{tpu_custom_call.1} parent=1 // pred_region
      %s798 = ssub.s32 512, 512
      %799 = vsyncadd [#allocation4], %s798
      %s800 = sshll.u32 [#allocation8], 4
      %s801 = int_to_ptr.vmem [resolvable:$true] %s800
      %806 = dma.vmem_to_hbm [thread:$0]  %s801, 512, %s5, [#allocation4], 128, 128, 8
    $region37: #{tpu_custom_call.1} parent=1 // pred_fallthru
      _
    // Predicated region
    $region38: #{tpu_custom_call.1} parent=1 // pred_check
      _
    $region39: #{tpu_custom_call.1} parent=1 // pred_check_branch
      %808 = sbr.rel (0) target = $region41
    $region40: #{tpu_custom_call.1} parent=1 // pred_region
      %809 = dma.done [#allocation4], 512
    $region41: #{tpu_custom_call.1} parent=1 // pred_fallthru
      _
    %810 = vsyncpa [#allocation3], 1
    %811 = vsyncpa [#allocation6], 1
    %812 = vsyncpa [#allocation4], 1

</llo_original>
